<compile_context>
chip_gen: v6e
topology: v6e:2x2x1
jax: 0.10.0
libtpu: 0.0.40
codegen_flags: <defaults>
</compile_context>

<pallas_src>
import functools

import jax
import jax.numpy as jnp
from jax.experimental import pallas as pl
from jax.experimental.pallas import tpu as pltpu

BN_EPS = 1e-5
LANE = 128
SUBLANE_F32 = 8
SUBLANE_BF16 = 16   # bf16 packs 2 rows per f32 sublane -> keep row offsets % 16


def _round_up(n, m):
    return ((n + m - 1) // m) * m


def _tab_encoder_kernel(layers, final, batch_norm, x_dim, x_k,
                        x_ref, w_ref, v_ref, out_ref):
    """Fused MLP-encoder forward.

    layers: tuple of (w_off, w_rows, cols, b_idx, g_idx, be_idx) per hidden layer.
    final : (w_off, w_rows, cols, b_idx).
    w_off/w_rows: static row offsets/extents (multiples of 16) into the packed
    bf16 weight buffer `w_ref`.  *_idx: static row indices into the small packed
    f32 vector buffer `v_ref` (bias / gamma / beta).
    """
    P = w_ref.shape[1]
    vecs = v_ref[...]                       # tiny (Rv, P) f32 block, loaded once

    def wview(off, rows, cols):
        w = w_ref[pl.ds(off, rows), :]
        return w if cols == P else w[:, :cols]

    def vrow(idx, cols):
        v = vecs[idx:idx + 1, :]
        return v if cols == P else v[:, :cols]

    h = x_ref[...].astype(jnp.float32)
    if x_k > x_dim:
        # Pad the contraction dim in-kernel; the matching weight rows are zero.
        h = jnp.concatenate(
            [h, jnp.zeros((h.shape[0], x_k - x_dim), jnp.float32)], axis=-1)

    for (w_off, w_rows, cols, b_idx, g_idx, be_idx) in layers:
        # bf16 MXU inputs, f32 accumulation.
        h = jnp.dot(h.astype(jnp.bfloat16), wview(w_off, w_rows, cols),
                    preferred_element_type=jnp.float32)
        if b_idx is not None:
            # Linear bias only when no BN follows (BN cancels it exactly).
            h = h + vrow(b_idx, cols)
        if batch_norm:
            # Training-mode BatchNorm1d: batch stats, biased variance, f32 math.
            mean = jnp.mean(h, axis=0, keepdims=True)
            hc = h - mean
            var = jnp.mean(hc * hc, axis=0, keepdims=True)   # two-pass: stable
            scale = jax.lax.rsqrt(var + BN_EPS)               # EUP (free slot)
            if g_idx is not None:                             # affine (bias=True)
                scale = scale * vrow(g_idx, cols)             # fold gamma in
                h = hc * scale + vrow(be_idx, cols)
            else:
                h = hc * scale
        h = jnp.maximum(h, 0.0)                               # ReLU (f32 VPU)

    w_off, w_rows, cols, b_idx = final
    z = jnp.dot(h.astype(jnp.bfloat16), wview(w_off, w_rows, cols),
                preferred_element_type=jnp.float32)
    if b_idx is not None:
        z = z + vrow(b_idx, cols)
    out_ref[...] = z.astype(out_ref.dtype)


def make_tab_encoder(x_dim, h_dim, z_dim, bias, num_layers, batch_norm, key):
    """Build params (PyTorch __init__ shapes), pack them, and return
    (pallas forward, pure-JAX reference)."""
    num_hidden = num_layers - 1
    hp, zp = _round_up(h_dim, LANE), _round_up(z_dim, LANE)
    P = max(hp, zp, LANE)
    x_k = _round_up(x_dim, SUBLANE_BF16)      # first-layer contraction extent

    w_segments = []   # bf16 weight blocks, concatenated row-wise
    v_rows = []       # f32 per-layer vectors (bias/gamma/beta), one row each
    ref_layers = []   # params replicating PyTorch (reference path)
    kern_layers = []  # static layout fed to the kernel
    w_row_off = 0

    def add_w(block_f32):
        nonlocal w_row_off
        w_segments.append(block_f32.astype(jnp.bfloat16))
        off = w_row_off
        w_row_off += block_f32.shape[0]
        return off

    def add_v(row_f32):
        v_rows.append(row_f32)
        return len(v_rows) - 1

    in_dim, in_rows = x_dim, x_k
    for _ in range(num_hidden):
        key, kw, kb = jax.random.split(key, 3)
        bound = 1.0 / float(in_dim) ** 0.5
        w = jax.random.uniform(kw, (in_dim, h_dim), jnp.float32, -bound, bound)
        b = (jax.random.uniform(kb, (1, h_dim), jnp.float32, -bound, bound)
             if bias else None)
        gamma = jnp.ones((1, h_dim), jnp.float32) if (batch_norm and bias) else None
        beta = jnp.zeros((1, h_dim), jnp.float32) if (batch_norm and bias) else None
        # Reference uses the bf16-rounded weight values (what the kernel stores)
        # but keeps all arithmetic in f32.
        w_q = w.astype(jnp.bfloat16).astype(jnp.float32)
        ref_layers.append((w_q, b, gamma, beta))

        w_off = add_w(jnp.zeros((in_rows, P), jnp.float32).at[:in_dim, :h_dim].set(w))
        b_idx = g_idx = be_idx = None
        if bias and not batch_norm:
            b_idx = add_v(jnp.zeros((1, P), jnp.float32).at[0, :h_dim].set(b[0]))
        if batch_norm and bias:
            g_idx = add_v(jnp.zeros((1, P), jnp.float32).at[0, :h_dim].set(gamma[0]))
            be_idx = add_v(jnp.zeros((1, P), jnp.float32).at[0, :h_dim].set(beta[0]))
        kern_layers.append((w_off, in_rows, hp, b_idx, g_idx, be_idx))
        in_dim, in_rows = h_dim, hp

    key, kw, kb = jax.random.split(key, 3)
    bound = 1.0 / float(in_dim) ** 0.5
    wf = jax.random.uniform(kw, (in_dim, z_dim), jnp.float32, -bound, bound)
    bf = (jax.random.uniform(kb, (1, z_dim), jnp.float32, -bound, bound)
          if bias else None)
    ref_final = (wf.astype(jnp.bfloat16).astype(jnp.float32), bf)

    wf_off = add_w(jnp.zeros((in_rows, P), jnp.float32).at[:in_dim, :z_dim].set(wf))
    bf_idx = None
    if bias:
        bf_idx = add_v(jnp.zeros((1, P), jnp.float32).at[0, :z_dim].set(bf[0]))
    kern_final = (wf_off, in_rows, zp, bf_idx)

    packed_w = jnp.concatenate(w_segments, axis=0)        # one bf16 weight DMA
    vr = _round_up(max(len(v_rows), 1), SUBLANE_F32)
    packed_v = jnp.zeros((vr, P), jnp.float32)
    if v_rows:
        packed_v = packed_v.at[:len(v_rows), :].set(jnp.concatenate(v_rows, axis=0))

    kernel = functools.partial(_tab_encoder_kernel, tuple(kern_layers), kern_final,
                               batch_norm, x_dim, x_k)

    def _vmem_budget_bytes(batch):
        # Everything is resident exactly once (no grid => no double-buffering).
        req = (packed_w.size * 2 + packed_v.size * 4        # params (bf16 + f32)
               + batch * x_dim * 4 + batch * zp * 4         # input + output slab
               + 6 * batch * P * 4)                         # live activations
        req = int(req * 1.5) + (4 << 20)                    # headroom
        try:
            phys = int(pltpu.get_tpu_info().vmem_capacity_bytes)
            if phys <= 0:
                phys = 64 << 20
        except Exception:
            phys = 64 << 20                                 # conservative (v7x per-TC)
        cap = int(phys * 0.85)
        return min(max(req, 32 << 20), cap)

    @jax.jit
    def forward(x):
        batch = x.shape[0]
        out = pl.pallas_call(
            kernel,
            out_shape=jax.ShapeDtypeStruct((batch, zp), jnp.float32),
            in_specs=[
                pl.BlockSpec(memory_space=pltpu.MemorySpace.VMEM),  # x (natural shape)
                pl.BlockSpec(memory_space=pltpu.MemorySpace.VMEM),  # packed bf16 weights
                pl.BlockSpec(memory_space=pltpu.MemorySpace.VMEM),  # packed f32 vectors
            ],
            out_specs=pl.BlockSpec(memory_space=pltpu.MemorySpace.VMEM),
            compiler_params=pltpu.CompilerParams(
                vmem_limit_bytes=_vmem_budget_bytes(batch)),
        )(x.astype(jnp.float32), packed_w, packed_v)
        # Lane-dense slab inside the kernel; callers that can consume the
        # padded (batch, 128) slab should skip this slice.
        return out[:, :z_dim]

    def reference(x):
        # Pure-JAX reference replicating the PyTorch forward (training-mode BN,
        # including the pre-BN linear bias that BN mathematically cancels).
        h = x.astype(jnp.float32)
        for (w, b, gamma, beta) in ref_layers:
            h = h @ w
            if b is not None:
                h = h + b
            if batch_norm:
                mean = jnp.mean(h, axis=0, keepdims=True)
                var = jnp.mean((h - mean) ** 2, axis=0, keepdims=True)
                h = (h - mean) / jnp.sqrt(var + BN_EPS)
                if gamma is not None:
                    h = h * gamma + beta
            h = jnp.maximum(h, 0.0)
        wf_, bf_ = ref_final
        z = h @ wf_
        if bf_ is not None:
            z = z + bf_
        return z

    return forward, reference


if __name__ == "__main__":
    # Small config consistent with the module: tabular x of shape (batch, x_dim).
    batch, x_dim, h_dim, z_dim = 8, 16, 32, 8
    bias, num_layers, batch_norm = True, 3, True

    key = jax.random.PRNGKey(0)
    key, kx, kp = jax.random.split(key, 3)
    x = jax.random.normal(kx, (batch, x_dim), jnp.float32)

    forward, reference = make_tab_encoder(
        x_dim, h_dim, z_dim, bias, num_layers, batch_norm, kp)

    z = forward(x)
    jax.block_until_ready(z)

    z_ref = reference(x)
    assert z.shape == (batch, z_dim)
    # bf16 MXU inputs (f32 accumulation / f32 BN) vs the f32 reference
    # => slightly relaxed tolerance.
    assert jnp.allclose(z, z_ref, atol=3e-2, rtol=3e-2), "mismatch vs reference"

    print("KERNEL_OK")
</pallas_src>

<mosaic_0001>
module attributes {stable_mosaic.version = 11 : i64} {
  func.func @_tab_encoder_kernel(%arg0: memref<8x16xf32, #tpu.memory_space<vmem>>, %arg1: memref<272x128xbf16, #tpu.memory_space<vmem>>, %arg2: memref<8x128xf32, #tpu.memory_space<vmem>>, %arg3: memref<8x128xf32, #tpu.memory_space<vmem>>) attributes {dimension_semantics = [], scalar_prefetch = 0 : i64, scratch_operands = 0 : i64, tpu.core_type = #tpu.core_type<tc>} {
    %c0 = arith.constant 0 : index
    %c0_0 = arith.constant 0 : index
    %0 = vector.load %arg2[%c0, %c0_0] : memref<8x128xf32, #tpu.memory_space<vmem>>, vector<8x128xf32>
    %c0_1 = arith.constant 0 : index
    %c0_2 = arith.constant 0 : index
    %1 = vector.load %arg0[%c0_1, %c0_2] : memref<8x16xf32, #tpu.memory_space<vmem>>, vector<8x16xf32>
    %2 = arith.truncf %1 : vector<8x16xf32> to vector<8x16xbf16>
    %c0_3 = arith.constant 0 : index
    %c0_4 = arith.constant 0 : index
    %3 = vector.load %arg1[%c0_3, %c0_4] : memref<272x128xbf16, #tpu.memory_space<vmem>>, vector<16x128xbf16>
    %cst = arith.constant dense<0.000000e+00> : vector<8x128xf32>
    %4 = tpu.matmul %2, %3, %cst {dimension_numbers = #tpu.dot_dimension_numbers<[1], [0], [0], [1], [0, 0, 1, 1], [], []>} : vector<8x16xbf16>, vector<16x128xbf16>, vector<8x128xf32> -> vector<8x128xf32>
    %cst_5 = arith.constant dense<0.000000e+00> : vector<128xf32>
    %5 = vector.multi_reduction <add>, %4, %cst_5 [0] : vector<8x128xf32> to vector<128xf32>
    %6 = vector.shape_cast %5 : vector<128xf32> to vector<1x128xf32>
    %cst_6 = arith.constant 8.000000e+00 : f32
    %7 = vector.broadcast %cst_6 : f32 to vector<1x128xf32>
    %8 = arith.divf %6, %7 : vector<1x128xf32>
    %9 = vector.broadcast %8 : vector<1x128xf32> to vector<8x128xf32>
    %10 = arith.subf %4, %9 : vector<8x128xf32>
    %11 = arith.mulf %10, %10 : vector<8x128xf32>
    %cst_7 = arith.constant dense<0.000000e+00> : vector<128xf32>
    %12 = vector.multi_reduction <add>, %11, %cst_7 [0] : vector<8x128xf32> to vector<128xf32>
    %13 = vector.shape_cast %12 : vector<128xf32> to vector<1x128xf32>
    %cst_8 = arith.constant 8.000000e+00 : f32
    %14 = vector.broadcast %cst_8 : f32 to vector<1x128xf32>
    %15 = arith.divf %13, %14 : vector<1x128xf32>
    %cst_9 = arith.constant 9.99999974E-6 : f32
    %16 = vector.broadcast %cst_9 : f32 to vector<1x128xf32>
    %17 = arith.addf %15, %16 : vector<1x128xf32>
    %18 = math.rsqrt %17 : vector<1x128xf32>
    %19 = vector.extract_strided_slice %0 {offsets = [0, 0], sizes = [1, 128], strides = [1, 1]} : vector<8x128xf32> to vector<1x128xf32>
    %20 = arith.mulf %18, %19 : vector<1x128xf32>
    %21 = vector.broadcast %20 : vector<1x128xf32> to vector<8x128xf32>
    %22 = arith.mulf %10, %21 : vector<8x128xf32>
    %23 = vector.extract_strided_slice %0 {offsets = [1, 0], sizes = [1, 128], strides = [1, 1]} : vector<8x128xf32> to vector<1x128xf32>
    %24 = vector.broadcast %23 : vector<1x128xf32> to vector<8x128xf32>
    %25 = arith.addf %22, %24 : vector<8x128xf32>
    %cst_10 = arith.constant 0.000000e+00 : f32
    %26 = vector.broadcast %cst_10 : f32 to vector<8x128xf32>
    %27 = arith.maximumf %25, %26 : vector<8x128xf32>
    %28 = arith.truncf %27 : vector<8x128xf32> to vector<8x128xbf16>
    %c16 = arith.constant 16 : index
    %c0_11 = arith.constant 0 : index
    %29 = vector.load %arg1[%c16, %c0_11] : memref<272x128xbf16, #tpu.memory_space<vmem>>, vector<128x128xbf16>
    %cst_12 = arith.constant dense<0.000000e+00> : vector<8x128xf32>
    %30 = tpu.matmul %28, %29, %cst_12 {dimension_numbers = #tpu.dot_dimension_numbers<[1], [0], [0], [1], [0, 0, 1, 1], [], []>} : vector<8x128xbf16>, vector<128x128xbf16>, vector<8x128xf32> -> vector<8x128xf32>
    %cst_13 = arith.constant dense<0.000000e+00> : vector<128xf32>
    %31 = vector.multi_reduction <add>, %30, %cst_13 [0] : vector<8x128xf32> to vector<128xf32>
    %32 = vector.shape_cast %31 : vector<128xf32> to vector<1x128xf32>
    %cst_14 = arith.constant 8.000000e+00 : f32
    %33 = vector.broadcast %cst_14 : f32 to vector<1x128xf32>
    %34 = arith.divf %32, %33 : vector<1x128xf32>
    %35 = vector.broadcast %34 : vector<1x128xf32> to vector<8x128xf32>
    %36 = arith.subf %30, %35 : vector<8x128xf32>
    %37 = arith.mulf %36, %36 : vector<8x128xf32>
    %cst_15 = arith.constant dense<0.000000e+00> : vector<128xf32>
    %38 = vector.multi_reduction <add>, %37, %cst_15 [0] : vector<8x128xf32> to vector<128xf32>
    %39 = vector.shape_cast %38 : vector<128xf32> to vector<1x128xf32>
    %cst_16 = arith.constant 8.000000e+00 : f32
    %40 = vector.broadcast %cst_16 : f32 to vector<1x128xf32>
    %41 = arith.divf %39, %40 : vector<1x128xf32>
    %cst_17 = arith.constant 9.99999974E-6 : f32
    %42 = vector.broadcast %cst_17 : f32 to vector<1x128xf32>
    %43 = arith.addf %41, %42 : vector<1x128xf32>
    %44 = math.rsqrt %43 : vector<1x128xf32>
    %45 = vector.extract_strided_slice %0 {offsets = [2, 0], sizes = [1, 128], strides = [1, 1]} : vector<8x128xf32> to vector<1x128xf32>
    %46 = arith.mulf %44, %45 : vector<1x128xf32>
    %47 = vector.broadcast %46 : vector<1x128xf32> to vector<8x128xf32>
    %48 = arith.mulf %36, %47 : vector<8x128xf32>
    %49 = vector.extract_strided_slice %0 {offsets = [3, 0], sizes = [1, 128], strides = [1, 1]} : vector<8x128xf32> to vector<1x128xf32>
    %50 = vector.broadcast %49 : vector<1x128xf32> to vector<8x128xf32>
    %51 = arith.addf %48, %50 : vector<8x128xf32>
    %cst_18 = arith.constant 0.000000e+00 : f32
    %52 = vector.broadcast %cst_18 : f32 to vector<8x128xf32>
    %53 = arith.maximumf %51, %52 : vector<8x128xf32>
    %54 = arith.truncf %53 : vector<8x128xf32> to vector<8x128xbf16>
    %c144 = arith.constant 144 : index
    %c0_19 = arith.constant 0 : index
    %55 = vector.load %arg1[%c144, %c0_19] : memref<272x128xbf16, #tpu.memory_space<vmem>>, vector<128x128xbf16>
    %cst_20 = arith.constant dense<0.000000e+00> : vector<8x128xf32>
    %56 = tpu.matmul %54, %55, %cst_20 {dimension_numbers = #tpu.dot_dimension_numbers<[1], [0], [0], [1], [0, 0, 1, 1], [], []>} : vector<8x128xbf16>, vector<128x128xbf16>, vector<8x128xf32> -> vector<8x128xf32>
    %57 = vector.extract_strided_slice %0 {offsets = [4, 0], sizes = [1, 128], strides = [1, 1]} : vector<8x128xf32> to vector<1x128xf32>
    %58 = vector.broadcast %57 : vector<1x128xf32> to vector<8x128xf32>
    %59 = arith.addf %56, %58 : vector<8x128xf32>
    %c0_21 = arith.constant 0 : index
    %c0_22 = arith.constant 0 : index
    %60 = vector.load %arg3[%c0_21, %c0_22] : memref<8x128xf32, #tpu.memory_space<vmem>>, vector<8x128xf32>
    tpu.vector_store %arg3[%c0_21, %c0_22], %59 {strides = array<i32>} : memref<8x128xf32, #tpu.memory_space<vmem>>, vector<8x128xf32>,
    return
  }
}

</mosaic_0001>

<llo_original>
// kernel: forward.1
$region0: #{forward.1}
  #allocation0 [shape = 'u32[]', space=smem, size = 0x4, offset = 0x4, fixed_abs, tag = 'smem constant byte address 0x4 - core index']
  #allocation1 [shape = 'u32[144,128]{1,0:T(1,128)}', space=vmem, size = 0x12000, scoped, tag = 'internal scratch']
  %s0 = inlined_call_operand.hbm [shape: f32[8,16], index: 0, kind: input, shape index: {}]
  %s1 = inlined_call_operand.hbm [shape: bf16[272,128], index: 1, kind: input, shape index: {}]
  %s2 = inlined_call_operand.hbm [shape: f32[8,128], index: 2, kind: input, shape index: {}]
  %s3 = inlined_call_operand.hbm [shape: f32[8,128], index: 3, kind: output, shape index: {}]
  %s4 = sld [smem:[#allocation0]]
  $region34: #{forward.1} parent=0
    _
  %s6 = ssub.s32 1, %s4
  %s7 = scalar_select 0, %s6, %s4
  $region1: #{forward.1} parent=0
    #allocation2 [shape = 'u8[4096]{0}', space=vmem, size = 0x1000, scoped, tag = 'input window, operand 0, single buffered']
    #allocation3 [shape = 's32[1]{0}', space=sflag, size = 0x4, scoped, tag = 'scoped memory for forward.1']
    #allocation4 [shape = 's32[1]{0}', space=sflag, size = 0x4, scoped, tag = 'scoped memory for forward.1']
    #allocation5 [shape = 'u8[69632]{0}', space=vmem, size = 0x11000, scoped, tag = 'input window, operand 1, single buffered']
    #allocation6 [shape = 's32[1]{0}', space=sflag, size = 0x4, scoped, tag = 'scoped memory for forward.1']
    #allocation7 [shape = 'u8[4096]{0}', space=vmem, size = 0x1000, scoped, tag = 'input window, operand 2, single buffered']
    #allocation8 [shape = 'u8[4096]{0}', space=vmem, size = 0x1000, scoped, tag = 'output window, operand 0, single buffered']
    %8 = vsyncpa [#allocation3], 0
    %9 = vsyncpa [#allocation6], 0
    %10 = vsyncpa [#allocation4], 0
    // Predicated region
    $region2: #{forward.1} parent=1 // pred_check
      _
    $region3: #{forward.1} parent=1 // pred_check_branch
      %12 = sbr.rel (0) target = $region5
    $region4: #{forward.1} parent=1 // pred_region
      %s14 = ssub.s32 128, 128
      %15 = vsyncadd [#allocation3], %s14
      %s17 = sshll.u32 [#allocation2], 4
      %s18 = int_to_ptr.vmem [resolvable:$true] %s17
      %20 = dma.hbm_to_vmem [thread:$0]  %s0, 128, %s18, [#allocation3]
    $region5: #{forward.1} parent=1 // pred_fallthru
      _
    // Predicated region
    $region6: #{forward.1} parent=1 // pred_check
      _
    $region7: #{forward.1} parent=1 // pred_check_branch
      %22 = sbr.rel (0) target = $region9
    $region8: #{forward.1} parent=1 // pred_region
      %s24 = ssub.s32 2176, 2176
      %25 = vsyncadd [#allocation6], %s24
      %s26 = sshll.u32 [#allocation5], 4
      %s27 = int_to_ptr.vmem [resolvable:$true] %s26
      %32 = dma.hbm_to_vmem [thread:$0]  %s1, 2176, %s27, [#allocation6], 64, 64, 4
    $region9: #{forward.1} parent=1 // pred_fallthru
      _
    // Predicated region
    $region10: #{forward.1} parent=1 // pred_check
      _
    $region11: #{forward.1} parent=1 // pred_check_branch
      %34 = sbr.rel (0) target = $region13
    $region12: #{forward.1} parent=1 // pred_region
      %s36 = ssub.s32 128, 128
      %37 = vsyncadd [#allocation6], %s36
      %s39 = sshll.u32 [#allocation7], 4
      %s40 = int_to_ptr.vmem [resolvable:$true] %s39
      %42 = dma.hbm_to_vmem [thread:$0]  %s2, 128, %s40, [#allocation6]
    $region13: #{forward.1} parent=1 // pred_fallthru
      _
    // Predicated region
    $region14: #{forward.1} parent=1 // pred_check
      _
    $region15: #{forward.1} parent=1 // pred_check_branch
      %44 = sbr.rel (0) target = $region17
    $region16: #{forward.1} parent=1 // pred_region
      %45 = dma.done [#allocation3], 128
    $region17: #{forward.1} parent=1 // pred_fallthru
      _
    // Predicated region
    $region18: #{forward.1} parent=1 // pred_check
      _
    $region19: #{forward.1} parent=1 // pred_check_branch
      %47 = sbr.rel (0) target = $region21
    $region20: #{forward.1} parent=1 // pred_region
      %48 = dma.done [#allocation6], 2176
    $region21: #{forward.1} parent=1 // pred_fallthru
      _
    // Predicated region
    $region22: #{forward.1} parent=1 // pred_check
      _
    $region23: #{forward.1} parent=1 // pred_check_branch
      %50 = sbr.rel (0) target = $region25
    $region24: #{forward.1} parent=1 // pred_region
      %51 = dma.done [#allocation6], 128
    $region25: #{forward.1} parent=1 // pred_fallthru
      _
    %v53 = vld [vmem:[#allocation7] sm:$0xff]
    %v54 = vld [vmem:[#allocation2] sm:$0xff]
    %v55 = vpack.c.bf16 %v54, %v54
    %v56 = vld [vmem:[#allocation5] sm:$0xf]
    %v57 = vld [vmem:[#allocation5 + $0x4] sm:$0xf]
    %v60 = vunpack.c.l.b16 %v56
    %v61 = vunpack.c.l.b16 %v57
    %v62 = vpack.c.b16 %v61, %v60
    %vm64 = vcmask 130048
    %v66 = vsel %vm64, %v55, 0
    %68 = vmatprep.subr.bf16.mxu0 0
    %69 = vmatpush1.bf16.msra.mxu0 0
    %70 = vmatprep.subr.bf16.mxu0 0
    %71 = vmatpush1.bf16.msra.mxu0 0
    %72 = vmatprep.subr.bf16.mxu0 0
    %73 = vmatpush1.bf16.msra.mxu0 0
    %74 = vmatprep.subr.bf16.mxu0 0
    %75 = vmatpush1.bf16.msra.mxu0 0
    %76 = vmatprep.subr.bf16.mxu0 0
    %77 = vmatpush1.bf16.msra.mxu0 0
    %78 = vmatprep.subr.bf16.mxu0 0
    %79 = vmatpush1.bf16.msra.mxu0 0
    %80 = vmatprep.subr.bf16.mxu0 0
    %81 = vmatpush1.bf16.msra.mxu0 0
    %82 = vmatprep.subr.bf16.mxu0 0
    %83 = vmatpush1.bf16.msra.mxu0 %v62
    %84 = vmatprep.subr.bf16.mxu0 0
    %85 = vmatpush2.bf16.msra.mxu0 0
    %86 = vmatprep.subr.bf16.mxu0 0
    %87 = vmatpush2.bf16.msra.mxu0 0
    %88 = vmatprep.subr.bf16.mxu0 0
    %89 = vmatpush2.bf16.msra.mxu0 0
    %90 = vmatprep.subr.bf16.mxu0 0
    %91 = vmatpush2.bf16.msra.mxu0 0
    %92 = vmatprep.subr.bf16.mxu0 0
    %93 = vmatpush2.bf16.msra.mxu0 0
    %94 = vmatprep.subr.bf16.mxu0 0
    %95 = vmatpush2.bf16.msra.mxu0 0
    %96 = vmatprep.subr.bf16.mxu0 0
    %97 = vmatpush2.bf16.msra.mxu0 0
    %98 = vmatprep.subr.bf16.mxu0 0
    %99 = vmatpush2.bf16.msra.mxu0 0
    %100 = vmatprep.mubr.bf16.mxu0 0
    %101 = vmatmul.mubr.bf16.gmra.mxu0 %v66
    %v102 = vpop.f32.mrf.mxu0
    %v103 = vadd.f32 0.0, %v102
    %v104 = vpop.f32.mrf.mxu0
    %v105 = vpop.f32.mrf.mxu0
    %v106 = vpop.f32.mrf.mxu0
    %107 = vdwg.mxu0
    %v108 = vrot.slane %v103, 4
    %v109 = vadd.f32 %v103, %v108
    %v110 = vrot.slane %v109, 2
    %v111 = vadd.f32 %v109, %v110
    %v112 = vrot.slane %v111, 1
    %v113 = vadd.f32 %v111, %v112
    %v114 = vrcp.pop 8.0
    %v115 = vmul.f32 %v113, %v114
    %v116 = vsub.f32 %v103, %v115
    %v117 = vmul.f32 %v116, %v116
    %v118 = vrot.slane %v117, 4
    %v119 = vadd.f32 %v117, %v118
    %v120 = vrot.slane %v119, 2
    %v121 = vadd.f32 %v119, %v120
    %v122 = vrot.slane %v121, 1
    %v123 = vadd.f32 %v121, %v122
    %v124 = vmul.f32 %v123, %v114
    %v125 = vadd.f32 %v124, 1e-05
    %v126 = vrsqrt.pop %v125
    %v127 = vmul.f32 %v126, %v53
    %v128 = vlaneseq
    %v129 = vshrl.u32 %v128, 7
    %v130 = vsub.s32 0, %v129
    %v131 = vrot.slane %v127, %v130
    %v132 = vmul.f32 %v116, %v131
    %v133 = vlaneseq
    %v134 = vshrl.u32 %v133, 7
    %v135 = vsub.s32 1, %v134
    %v136 = vrot.slane %v53, %v135
    %v137 = vadd.f32 %v132, %v136
    %v138 = vmax.f32 %v137, 0.0
    %v139 = vpack.c.bf16 %v138, %v138
    %v140 = vld [vmem:[#allocation5 + $0x8] sm:$0xf]
    %v141 = vld [vmem:[#allocation5 + $0xc] sm:$0xf]
    %v142 = vld [vmem:[#allocation5 + $0x10] sm:$0xf]
    %v143 = vld [vmem:[#allocation5 + $0x14] sm:$0xf]
    %v144 = vld [vmem:[#allocation5 + $0x18] sm:$0xf]
    %v145 = vld [vmem:[#allocation5 + $0x1c] sm:$0xf]
    %v146 = vld [vmem:[#allocation5 + $0x20] sm:$0xf]
    %v147 = vld [vmem:[#allocation5 + $0x24] sm:$0xf]
    %v148 = vld [vmem:[#allocation5 + $0x28] sm:$0xf]
    %v149 = vld [vmem:[#allocation5 + $0x2c] sm:$0xf]
    %v150 = vld [vmem:[#allocation5 + $0x30] sm:$0xf]
    %v151 = vld [vmem:[#allocation5 + $0x34] sm:$0xf]
    %v152 = vld [vmem:[#allocation5 + $0x38] sm:$0xf]
    %v153 = vld [vmem:[#allocation5 + $0x3c] sm:$0xf]
    %v154 = vld [vmem:[#allocation5 + $0x40] sm:$0xf]
    %v155 = vld [vmem:[#allocation5 + $0x44] sm:$0xf]
    %v172 = vunpack.c.l.b16 %v140
    %v173 = vunpack.c.l.b16 %v141
    %v174 = vunpack.c.l.b16 %v142
    %v175 = vunpack.c.l.b16 %v143
    %v176 = vunpack.c.l.b16 %v144
    %v177 = vunpack.c.l.b16 %v145
    %v178 = vunpack.c.l.b16 %v146
    %v179 = vunpack.c.l.b16 %v147
    %v180 = vunpack.c.l.b16 %v148
    %v181 = vunpack.c.l.b16 %v149
    %v182 = vunpack.c.l.b16 %v150
    %v183 = vunpack.c.l.b16 %v151
    %v184 = vunpack.c.l.b16 %v152
    %v185 = vunpack.c.l.b16 %v153
    %v186 = vunpack.c.l.b16 %v154
    %v187 = vunpack.c.l.b16 %v155
    %v188 = vpack.c.b16 %v173, %v172
    %v189 = vpack.c.b16 %v175, %v174
    %v190 = vpack.c.b16 %v177, %v176
    %v191 = vpack.c.b16 %v179, %v178
    %v192 = vpack.c.b16 %v181, %v180
    %v193 = vpack.c.b16 %v183, %v182
    %v194 = vpack.c.b16 %v185, %v184
    %v195 = vpack.c.b16 %v187, %v186
    %204 = vmatprep.subr.bf16.mxu0 0
    %205 = vmatpush1.bf16.msra.mxu0 %v195
    %206 = vmatprep.subr.bf16.mxu0 0
    %207 = vmatpush1.bf16.msra.mxu0 %v194
    %208 = vmatprep.subr.bf16.mxu0 0
    %209 = vmatpush1.bf16.msra.mxu0 %v193
    %210 = vmatprep.subr.bf16.mxu0 0
    %211 = vmatpush1.bf16.msra.mxu0 %v192
    %212 = vmatprep.subr.bf16.mxu0 0
    %213 = vmatpush1.bf16.msra.mxu0 %v191
    %214 = vmatprep.subr.bf16.mxu0 0
    %215 = vmatpush1.bf16.msra.mxu0 %v190
    %216 = vmatprep.subr.bf16.mxu0 0
    %217 = vmatpush1.bf16.msra.mxu0 %v189
    %218 = vmatprep.subr.bf16.mxu0 0
    %219 = vmatpush1.bf16.msra.mxu0 %v188
    %220 = vmatprep.subr.bf16.mxu0 0
    %221 = vmatpush2.bf16.msra.mxu0 0
    %222 = vmatprep.subr.bf16.mxu0 0
    %223 = vmatpush2.bf16.msra.mxu0 0
    %224 = vmatprep.subr.bf16.mxu0 0
    %225 = vmatpush2.bf16.msra.mxu0 0
    %226 = vmatprep.subr.bf16.mxu0 0
    %227 = vmatpush2.bf16.msra.mxu0 0
    %228 = vmatprep.subr.bf16.mxu0 0
    %229 = vmatpush2.bf16.msra.mxu0 0
    %230 = vmatprep.subr.bf16.mxu0 0
    %231 = vmatpush2.bf16.msra.mxu0 0
    %232 = vmatprep.subr.bf16.mxu0 0
    %233 = vmatpush2.bf16.msra.mxu0 0
    %234 = vmatprep.subr.bf16.mxu0 0
    %235 = vmatpush2.bf16.msra.mxu0 0
    %236 = vmatprep.mubr.bf16.mxu0 0
    %237 = vmatmul.mubr.bf16.gmra.mxu0 %v139
    %v238 = vpop.f32.mrf.mxu0
    %v239 = vadd.f32 0.0, %v238
    %v240 = vpop.f32.mrf.mxu0
    %v241 = vpop.f32.mrf.mxu0
    %v242 = vpop.f32.mrf.mxu0
    %243 = vdwg.mxu0
    %v244 = vrot.slane %v239, 4
    %v245 = vadd.f32 %v239, %v244
    %v246 = vrot.slane %v245, 2
    %v247 = vadd.f32 %v245, %v246
    %v248 = vrot.slane %v247, 1
    %v249 = vadd.f32 %v247, %v248
    %v250 = vmul.f32 %v249, %v114
    %v251 = vsub.f32 %v239, %v250
    %v252 = vmul.f32 %v251, %v251
    %v253 = vrot.slane %v252, 4
    %v254 = vadd.f32 %v252, %v253
    %v255 = vrot.slane %v254, 2
    %v256 = vadd.f32 %v254, %v255
    %v257 = vrot.slane %v256, 1
    %v258 = vadd.f32 %v256, %v257
    %v259 = vmul.f32 %v258, %v114
    %v260 = vadd.f32 %v259, 1e-05
    %v261 = vrsqrt.pop %v260
    %v262 = vmul.f32 %v261, %v53
    %v263 = vlaneseq
    %v264 = vshrl.u32 %v263, 7
    %v265 = vsub.s32 2, %v264
    %v266 = vrot.slane %v262, %v265
    %v267 = vmul.f32 %v251, %v266
    %v268 = vlaneseq
    %v269 = vshrl.u32 %v268, 7
    %v270 = vsub.s32 3, %v269
    %v271 = vrot.slane %v53, %v270
    %v272 = vadd.f32 %v267, %v271
    %v273 = vmax.f32 %v272, 0.0
    %v274 = vpack.c.bf16 %v273, %v273
    %v275 = vld [vmem:[#allocation5 + $0x48] sm:$0xf]
    %v276 = vld [vmem:[#allocation5 + $0x4c] sm:$0xf]
    %v277 = vld [vmem:[#allocation5 + $0x50] sm:$0xf]
    %v278 = vld [vmem:[#allocation5 + $0x54] sm:$0xf]
    %v279 = vld [vmem:[#allocation5 + $0x58] sm:$0xf]
    %v280 = vld [vmem:[#allocation5 + $0x5c] sm:$0xf]
    %v281 = vld [vmem:[#allocation5 + $0x60] sm:$0xf]
    %v282 = vld [vmem:[#allocation5 + $0x64] sm:$0xf]
    %v283 = vld [vmem:[#allocation5 + $0x68] sm:$0xf]
    %v284 = vld [vmem:[#allocation5 + $0x6c] sm:$0xf]
    %v285 = vld [vmem:[#allocation5 + $0x70] sm:$0xf]
    %v286 = vld [vmem:[#allocation5 + $0x74] sm:$0xf]
    %v287 = vld [vmem:[#allocation5 + $0x78] sm:$0xf]
    %v288 = vld [vmem:[#allocation5 + $0x7c] sm:$0xf]
    %v289 = vld [vmem:[#allocation5 + $0x80] sm:$0xf]
    %v290 = vld [vmem:[#allocation5 + $0x84] sm:$0xf]
    %v291 = vlaneseq
    %v292 = vshrl.u32 %v291, 7
    %v293 = vsub.s32 4, %v292
    %v294 = vrot.slane %v53, %v293
    %v311 = vunpack.c.l.b16 %v275
    %v312 = vunpack.c.l.b16 %v276
    %v313 = vunpack.c.l.b16 %v277
    %v314 = vunpack.c.l.b16 %v278
    %v315 = vunpack.c.l.b16 %v279
    %v316 = vunpack.c.l.b16 %v280
    %v317 = vunpack.c.l.b16 %v281
    %v318 = vunpack.c.l.b16 %v282
    %v319 = vunpack.c.l.b16 %v283
    %v320 = vunpack.c.l.b16 %v284
    %v321 = vunpack.c.l.b16 %v285
    %v322 = vunpack.c.l.b16 %v286
    %v323 = vunpack.c.l.b16 %v287
    %v324 = vunpack.c.l.b16 %v288
    %v325 = vunpack.c.l.b16 %v289
    %v326 = vunpack.c.l.b16 %v290
    %v327 = vpack.c.b16 %v312, %v311
    %v328 = vpack.c.b16 %v314, %v313
    %v329 = vpack.c.b16 %v316, %v315
    %v330 = vpack.c.b16 %v318, %v317
    %v331 = vpack.c.b16 %v320, %v319
    %v332 = vpack.c.b16 %v322, %v321
    %v333 = vpack.c.b16 %v324, %v323
    %v334 = vpack.c.b16 %v326, %v325
    %343 = vmatprep.subr.bf16.mxu0 0
    %344 = vmatpush1.bf16.msra.mxu0 %v334
    %345 = vmatprep.subr.bf16.mxu0 0
    %346 = vmatpush1.bf16.msra.mxu0 %v333
    %347 = vmatprep.subr.bf16.mxu0 0
    %348 = vmatpush1.bf16.msra.mxu0 %v332
    %349 = vmatprep.subr.bf16.mxu0 0
    %350 = vmatpush1.bf16.msra.mxu0 %v331
    %351 = vmatprep.subr.bf16.mxu0 0
    %352 = vmatpush1.bf16.msra.mxu0 %v330
    %353 = vmatprep.subr.bf16.mxu0 0
    %354 = vmatpush1.bf16.msra.mxu0 %v329
    %355 = vmatprep.subr.bf16.mxu0 0
    %356 = vmatpush1.bf16.msra.mxu0 %v328
    %357 = vmatprep.subr.bf16.mxu0 0
    %358 = vmatpush1.bf16.msra.mxu0 %v327
    %359 = vmatprep.subr.bf16.mxu0 0
    %360 = vmatpush2.bf16.msra.mxu0 0
    %361 = vmatprep.subr.bf16.mxu0 0
    %362 = vmatpush2.bf16.msra.mxu0 0
    %363 = vmatprep.subr.bf16.mxu0 0
    %364 = vmatpush2.bf16.msra.mxu0 0
    %365 = vmatprep.subr.bf16.mxu0 0
    %366 = vmatpush2.bf16.msra.mxu0 0
    %367 = vmatprep.subr.bf16.mxu0 0
    %368 = vmatpush2.bf16.msra.mxu0 0
    %369 = vmatprep.subr.bf16.mxu0 0
    %370 = vmatpush2.bf16.msra.mxu0 0
    %371 = vmatprep.subr.bf16.mxu0 0
    %372 = vmatpush2.bf16.msra.mxu0 0
    %373 = vmatprep.subr.bf16.mxu0 0
    %374 = vmatpush2.bf16.msra.mxu0 0
    %375 = vmatprep.mubr.bf16.mxu0 0
    %376 = vmatmul.mubr.bf16.gmra.mxu0 %v274
    %v377 = vpop.f32.mrf.mxu0
    %v378 = vadd.f32 %v294, %v377
    %v379 = vpop.f32.mrf.mxu0
    %v380 = vpop.f32.mrf.mxu0
    %v381 = vpop.f32.mrf.mxu0
    %382 = vdwg.mxu0
    %383 = vst [vmem:[#allocation8] sm:$0xff] %v378
    // Predicated region
    $region26: #{forward.1} parent=1 // pred_check
      _
    $region27: #{forward.1} parent=1 // pred_check_branch
      %385 = sbr.rel (0) target = $region29
    $region28: #{forward.1} parent=1 // pred_region
      %s387 = ssub.s32 128, 128
      %388 = vsyncadd [#allocation4], %s387
      %s390 = sshll.u32 [#allocation8], 4
      %s391 = int_to_ptr.vmem [resolvable:$true] %s390
      %393 = dma.vmem_to_hbm [thread:$0]  %s391, 128, %s3, [#allocation4]
    $region29: #{forward.1} parent=1 // pred_fallthru
      _
    // Predicated region
    $region30: #{forward.1} parent=1 // pred_check
      _
    $region31: #{forward.1} parent=1 // pred_check_branch
      %395 = sbr.rel (0) target = $region33
    $region32: #{forward.1} parent=1 // pred_region
      %396 = dma.done [#allocation4], 128
    $region33: #{forward.1} parent=1 // pred_fallthru
      _
    %397 = vsyncpa [#allocation3], 1
    %398 = vsyncpa [#allocation6], 1
    %399 = vsyncpa [#allocation4], 1

</llo_original>
